<compile_context>
chip_gen: v7x
topology: tpu7x:2x2x1
jax: 0.10.0
libtpu: 0.0.40
codegen_flags: <defaults>
</compile_context>

<pallas_src>
import functools

import jax
import jax.numpy as jnp
from jax.experimental import pallas as pl
from jax.experimental.pallas import tpu as pltpu


_LANES = 384          # lcm(6, 128): channel id == lane % 6 on every row
_MAX_TILE_ROWS = 512  # 512 * 384 * 4 B = 768 KiB per f32 input block
_NUM_CORES = 2        # leading "parallel" grid axis (megacore on 2-TC chips)


def _yolo_loss_kernel(pred_ref, targ_ref, out_ref, acc_ref, *,
                      total_elems, tile_rows, blocks_per_core,
                      w_coord, w_box, w_conf, w_class):
    c = pl.program_id(0)          # core / output-partial index   ("parallel")
    i = pl.program_id(1)          # reduction step over row tiles ("arbitrary")
    last = pl.num_programs(1) - 1

    @pl.when(i == 0)
    def _init():
        acc_ref[...] = jnp.zeros_like(acc_ref)
        out_ref[...] = jnp.zeros_like(out_ref)

    # Upcast in-register (inputs may be bf16); all math in f32.
    p = pred_ref[...].astype(jnp.float32)      # (tile_rows, 384)
    t = targ_ref[...].astype(jnp.float32)

    # Per-lane channel ids / fused lambda-mean weights, computed in-kernel
    # from an iota (no captured array constants). Shapes broadcast from
    # (1, 384) to (tile_rows, 384).
    lane = jax.lax.broadcasted_iota(jnp.int32, (1, _LANES), 1)
    ch = lane % 6
    is_bce = ch >= 4                                  # conf / class channels
    w = jnp.where(ch < 2, jnp.float32(w_coord),
                  jnp.where(ch < 4, jnp.float32(w_box),
                            jnp.where(ch == 4, jnp.float32(w_conf),
                                      jnp.float32(w_class))))

    # Validity mask from the *logical* flat element index: covers both the
    # ragged tail of the last row-tile and fully-clamped blocks of idle cores.
    row = jax.lax.broadcasted_iota(jnp.int32, p.shape, 0)
    col = jax.lax.broadcasted_iota(jnp.int32, p.shape, 1)
    logical_block = c * blocks_per_core + i
    gidx = (logical_block * tile_rows + row) * _LANES + col
    valid = gidx < total_elems

    # Element-wise terms (pure VPU/EUP filler under the DMA bound).
    mse = (p - t) * (p - t)
    # numerically stable BCE-with-logits: max(x,0) - x*z + log1p(exp(-|x|))
    bce = jnp.maximum(p, 0.0) - p * t + jnp.log1p(jnp.exp(-jnp.abs(p)))
    term = jnp.where(is_bce, bce, mse) * w
    acc_ref[...] += jnp.where(valid, term, 0.0)

    # Single deferred cross-lane reduction per core.
    @pl.when(i == last)
    def _finalize():
        partial = jnp.sum(acc_ref[...])
        r = jax.lax.broadcasted_iota(jnp.int32, out_ref.shape, 0)
        l = jax.lax.broadcasted_iota(jnp.int32, out_ref.shape, 1)
        out_ref[...] = jnp.where((r == 0) & (l == 0), partial, 0.0)


def yolo_loss2(predictions, target, grid_size,
               lambda_coord=0.05, lambda_class=1.1,
               lambda_box=0.05, lambda_conf=1.0):
    """JAX/Pallas equivalent of YoloLoss2.forward. Returns a scalar."""
    del grid_size  # the reduction is global; the (-1, S, S, 6) view is only a view

    pred_flat = jnp.reshape(predictions, (-1,))
    targ_flat = jnp.reshape(target, (-1,))
    total = pred_flat.shape[0]
    assert total % 6 == 0, "flattened input length must be a multiple of 6"
    n_cells = total // 6

    # Lane-dense (rows, 384) slab; pad only if 6*N is not a multiple of 384
    # (padded elements are excluded by the in-kernel validity mask).
    rows = -(-total // _LANES)
    padded = rows * _LANES
    if padded != total:
        pred_flat = jnp.pad(pred_flat, (0, padded - total))
        targ_flat = jnp.pad(targ_flat, (0, padded - total))
    pred2d = jnp.reshape(pred_flat, (rows, _LANES))
    targ2d = jnp.reshape(targ_flat, (rows, _LANES))

    tile_rows = rows if rows <= _MAX_TILE_ROWS else _MAX_TILE_ROWS
    nblocks = -(-rows // tile_rows)
    blocks_per_core = -(-nblocks // _NUM_CORES)

    # Fold lambda / mean denominators into per-channel scalar weights
    # (plain Python floats, baked into the kernel as scalar literals).
    w_coord = float(lambda_coord) / (2.0 * n_cells)
    w_box = float(lambda_box) / (2.0 * n_cells)
    w_conf = float(lambda_conf) / float(n_cells)
    w_class = float(lambda_class) / float(n_cells)

    kernel = functools.partial(
        _yolo_loss_kernel,
        total_elems=int(total),
        tile_rows=int(tile_rows),
        blocks_per_core=int(blocks_per_core),
        w_coord=w_coord, w_box=w_box, w_conf=w_conf, w_class=w_class)

    def in_map(c, i):
        # Clamp to a valid block; fully out-of-range logical blocks contribute
        # zero via the in-kernel mask (mask uses the unclamped logical index).
        return (jnp.minimum(c * blocks_per_core + i, nblocks - 1), 0)

    out = pl.pallas_call(
        kernel,
        out_shape=jax.ShapeDtypeStruct((_NUM_CORES * 8, 128), jnp.float32),
        grid=(_NUM_CORES, blocks_per_core),
        in_specs=[
            pl.BlockSpec((tile_rows, _LANES), in_map),
            pl.BlockSpec((tile_rows, _LANES), in_map),
        ],
        out_specs=pl.BlockSpec((8, 128), lambda c, i: (c, 0)),
        scratch_shapes=[pltpu.VMEM((tile_rows, _LANES), jnp.float32)],
        compiler_params=pltpu.CompilerParams(
            dimension_semantics=("parallel", "arbitrary")),
    )(pred2d, targ2d)

    # Each core wrote its partial at [0, 0] of its (8, 128) block, zeros elsewhere.
    return jnp.sum(out)


def _reference_loss(predictions, target, grid_size,
                    lambda_coord=0.05, lambda_class=1.1,
                    lambda_box=0.05, lambda_conf=1.0):
    s = grid_size
    p = jnp.reshape(predictions, (-1, s, s, 6)).astype(jnp.float32)
    t = jnp.reshape(target, (-1, s, s, 6)).astype(jnp.float32)

    def bce(x, z):
        return jnp.mean(jnp.maximum(x, 0.0) - x * z
                        + jnp.log1p(jnp.exp(-jnp.abs(x))))

    coord = jnp.mean((p[..., 0:2] - t[..., 0:2]) ** 2) * lambda_coord
    box = jnp.mean((p[..., 2:4] - t[..., 2:4]) ** 2) * lambda_box
    conf = lambda_conf * bce(p[..., 4], t[..., 4])
    cls = bce(p[..., 5], t[..., 5]) * lambda_class
    return coord + box + conf + cls


if __name__ == "__main__":
    key = jax.random.PRNGKey(0)
    k1, k2, k3 = jax.random.split(key, 3)

    batch, grid_size = 2, 8          # N = 2*8*8 = 128 cells
    predictions = jax.random.normal(k1, (batch, grid_size, grid_size, 6),
                                    dtype=jnp.float32)
    # targets: boxes in [0,1], conf/class in {0,1}
    boxes = jax.random.uniform(k2, (batch, grid_size, grid_size, 4),
                               dtype=jnp.float32)
    labels = (jax.random.uniform(k3, (batch, grid_size, grid_size, 2))
              > 0.5).astype(jnp.float32)
    target = jnp.concatenate([boxes, labels], axis=-1)

    loss = yolo_loss2(predictions, target, grid_size)
    loss = jax.block_until_ready(loss)

    ref = _reference_loss(predictions, target, grid_size)
    assert jnp.allclose(loss, ref, rtol=1e-5, atol=1e-5), (loss, ref)

    print("KERNEL_OK")
</pallas_src>

<mosaic_0001>
module attributes {stable_mosaic.version = 11 : i64} {
  func.func @_yolo_loss_kernel(%arg0: i32, %arg1: i32, %arg2: memref<2x384xf32, #tpu.memory_space<vmem>>, %arg3: memref<2x384xf32, #tpu.memory_space<vmem>>, %arg4: memref<8x128xf32, #tpu.memory_space<vmem>>, %arg5: memref<2x384xf32, #tpu.memory_space<vmem>>) attributes {dimension_semantics = [#tpu.dimension_semantics<parallel>, #tpu.dimension_semantics<arbitrary>], iteration_bounds = array<i64: 2, 1>, scalar_prefetch = 0 : i64, scratch_operands = 1 : i64, tpu.core_type = #tpu.core_type<tc>, window_params = [{transform_indices = @transform_0, window_bounds = array<i64: 2, 384>}, {transform_indices = @transform_1, window_bounds = array<i64: 2, 384>}, {transform_indices = @transform_2, window_bounds = array<i64: 8, 128>}]} {
    %c0_i32 = arith.constant 0 : i32
    %0 = arith.cmpi eq, %arg1, %c0_i32 : i32
    %1 = arith.extui %0 : i1 to i32
    %c0_i32_0 = arith.constant 0 : i32
    %2 = arith.cmpi ne, %1, %c0_i32_0 : i32
    scf.if %2 {
      %cst_24 = arith.constant 0.000000e+00 : f32
      %75 = vector.broadcast %cst_24 : f32 to vector<2x384xf32>
      %c0_25 = arith.constant 0 : index
      %c0_26 = arith.constant 0 : index
      %76 = vector.load %arg5[%c0_25, %c0_26] : memref<2x384xf32, #tpu.memory_space<vmem>>, vector<2x384xf32>
      tpu.vector_store %arg5[%c0_25, %c0_26], %75 {strides = array<i32>} : memref<2x384xf32, #tpu.memory_space<vmem>>, vector<2x384xf32>,
      %cst_27 = arith.constant 0.000000e+00 : f32
      %77 = vector.broadcast %cst_27 : f32 to vector<8x128xf32>
      %c0_28 = arith.constant 0 : index
      %c0_29 = arith.constant 0 : index
      %78 = vector.load %arg4[%c0_28, %c0_29] : memref<8x128xf32, #tpu.memory_space<vmem>>, vector<8x128xf32>
      tpu.vector_store %arg4[%c0_28, %c0_29], %77 {strides = array<i32>} : memref<8x128xf32, #tpu.memory_space<vmem>>, vector<8x128xf32>,
    } else {
    }
    %c0 = arith.constant 0 : index
    %c0_1 = arith.constant 0 : index
    %3 = vector.load %arg2[%c0, %c0_1] : memref<2x384xf32, #tpu.memory_space<vmem>>, vector<2x384xf32>
    %c0_2 = arith.constant 0 : index
    %c0_3 = arith.constant 0 : index
    %4 = vector.load %arg3[%c0_2, %c0_3] : memref<2x384xf32, #tpu.memory_space<vmem>>, vector<2x384xf32>
    %5 = tpu.iota {dimensions = array<i32: 1>} : vector<1x384xi32>
    %c6_i32 = arith.constant 6 : i32
    %c0_i32_4 = arith.constant 0 : i32
    %6 = arith.cmpi eq, %c6_i32, %c0_i32_4 : i32
    %c1_i32 = arith.constant 1 : i32
    %7 = arith.select %6, %c1_i32, %c6_i32 : i32
    %8 = vector.broadcast %7 : i32 to vector<1x384xi32>
    %9 = arith.remsi %5, %8 : vector<1x384xi32>
    %c0_i32_5 = arith.constant 0 : i32
    %10 = vector.broadcast %c0_i32_5 : i32 to vector<1x384xi32>
    %11 = arith.cmpi ne, %9, %10 : vector<1x384xi32>
    %c0_i32_6 = arith.constant 0 : i32
    %12 = vector.broadcast %c0_i32_6 : i32 to vector<1x384xi32>
    %13 = arith.cmpi slt, %9, %12 : vector<1x384xi32>
    %c0_i32_7 = arith.constant 0 : i32
    %14 = arith.cmpi slt, %7, %c0_i32_7 : i32
    %15 = vector.broadcast %14 : i1 to vector<1x384xi1>
    %16 = vector.broadcast %15 : vector<1x384xi1> to vector<1x384xi1>
    %17 = arith.xori %13, %16 : vector<1x384xi1>
    %18 = arith.andi %17, %11 : vector<1x384xi1>
    %19 = vector.broadcast %7 : i32 to vector<1x384xi32>
    %20 = arith.addi %9, %19 : vector<1x384xi32>
    %21 = arith.select %18, %20, %9 : vector<1x384xi1>, vector<1x384xi32>
    %c4_i32 = arith.constant 4 : i32
    %22 = vector.broadcast %c4_i32 : i32 to vector<1x384xi32>
    %23 = arith.cmpi sge, %21, %22 : vector<1x384xi32>
    %c2_i32 = arith.constant 2 : i32
    %24 = vector.broadcast %c2_i32 : i32 to vector<1x384xi32>
    %25 = arith.cmpi slt, %21, %24 : vector<1x384xi32>
    %c4_i32_8 = arith.constant 4 : i32
    %26 = vector.broadcast %c4_i32_8 : i32 to vector<1x384xi32>
    %27 = arith.cmpi slt, %21, %26 : vector<1x384xi32>
    %c4_i32_9 = arith.constant 4 : i32
    %28 = vector.broadcast %c4_i32_9 : i32 to vector<1x384xi32>
    %29 = arith.cmpi eq, %21, %28 : vector<1x384xi32>
    %cst = arith.constant 7.812500e-03 : f32
    %cst_10 = arith.constant 8.593750e-03 : f32
    %30 = vector.broadcast %cst : f32 to vector<1x384xf32>
    %31 = vector.broadcast %cst_10 : f32 to vector<1x384xf32>
    %32 = arith.select %29, %30, %31 : vector<1x384xi1>, vector<1x384xf32>
    %cst_11 = arith.constant 1.95312503E-4 : f32
    %33 = vector.broadcast %cst_11 : f32 to vector<1x384xf32>
    %34 = arith.select %27, %33, %32 : vector<1x384xi1>, vector<1x384xf32>
    %cst_12 = arith.constant 1.95312503E-4 : f32
    %35 = vector.broadcast %cst_12 : f32 to vector<1x384xf32>
    %36 = arith.select %25, %35, %34 : vector<1x384xi1>, vector<1x384xf32>
    %37 = tpu.iota {dimensions = array<i32: 0>} : vector<2x384xi32>
    %38 = tpu.iota {dimensions = array<i32: 1>} : vector<2x384xi32>
    %c1_i32_13 = arith.constant 1 : i32
    %39 = arith.muli %arg0, %c1_i32_13 : i32
    %40 = arith.addi %39, %arg1 : i32
    %c2_i32_14 = arith.constant 2 : i32
    %41 = arith.muli %40, %c2_i32_14 : i32
    %42 = vector.broadcast %41 : i32 to vector<2x384xi32>
    %43 = arith.addi %42, %37 : vector<2x384xi32>
    %c384_i32 = arith.constant 384 : i32
    %44 = vector.broadcast %c384_i32 : i32 to vector<2x384xi32>
    %45 = arith.muli %43, %44 : vector<2x384xi32>
    %46 = arith.addi %45, %38 : vector<2x384xi32>
    %c768_i32 = arith.constant 768 : i32
    %47 = vector.broadcast %c768_i32 : i32 to vector<2x384xi32>
    %48 = arith.cmpi slt, %46, %47 : vector<2x384xi32>
    %49 = arith.subf %3, %4 : vector<2x384xf32>
    %50 = arith.subf %3, %4 : vector<2x384xf32>
    %51 = arith.mulf %49, %50 : vector<2x384xf32>
    %cst_15 = arith.constant 0.000000e+00 : f32
    %52 = vector.broadcast %cst_15 : f32 to vector<2x384xf32>
    %53 = arith.maximumf %3, %52 : vector<2x384xf32>
    %54 = arith.mulf %3, %4 : vector<2x384xf32>
    %55 = arith.subf %53, %54 : vector<2x384xf32>
    %56 = math.absf %3 : vector<2x384xf32>
    %cst_16 = arith.constant 0.000000e+00 : f32
    %57 = vector.broadcast %cst_16 : f32 to vector<2x384xf32>
    %58 = arith.subf %57, %56 : vector<2x384xf32>
    %59 = math.exp %58 : vector<2x384xf32>
    %60 = math.log1p %59 : vector<2x384xf32>
    %61 = arith.addf %55, %60 : vector<2x384xf32>
    %62 = vector.shape_cast %23 : vector<1x384xi1> to vector<1x384xi1>
    %63 = vector.broadcast %62 : vector<1x384xi1> to vector<2x384xi1>
    %64 = arith.select %63, %61, %51 : vector<2x384xi1>, vector<2x384xf32>
    %65 = vector.broadcast %36 : vector<1x384xf32> to vector<2x384xf32>
    %66 = arith.mulf %64, %65 : vector<2x384xf32>
    %c0_17 = arith.constant 0 : index
    %c0_18 = arith.constant 0 : index
    %67 = vector.load %arg5[%c0_17, %c0_18] : memref<2x384xf32, #tpu.memory_space<vmem>>, vector<2x384xf32>
    %cst_19 = arith.constant 0.000000e+00 : f32
    %68 = vector.broadcast %cst_19 : f32 to vector<2x384xf32>
    %69 = arith.select %48, %66, %68 : vector<2x384xi1>, vector<2x384xf32>
    %70 = arith.addf %67, %69 : vector<2x384xf32>
    %c0_20 = arith.constant 0 : index
    %c0_21 = arith.constant 0 : index
    %71 = vector.load %arg5[%c0_20, %c0_21] : memref<2x384xf32, #tpu.memory_space<vmem>>, vector<2x384xf32>
    tpu.vector_store %arg5[%c0_20, %c0_21], %70 {strides = array<i32>} : memref<2x384xf32, #tpu.memory_space<vmem>>, vector<2x384xf32>,
    %c0_i32_22 = arith.constant 0 : i32
    %72 = arith.cmpi eq, %arg1, %c0_i32_22 : i32
    %73 = arith.extui %72 : i1 to i32
    %c0_i32_23 = arith.constant 0 : i32
    %74 = arith.cmpi ne, %73, %c0_i32_23 : i32
    scf.if %74 {
      %c0_24 = arith.constant 0 : index
      %c0_25 = arith.constant 0 : index
      %75 = vector.load %arg5[%c0_24, %c0_25] : memref<2x384xf32, #tpu.memory_space<vmem>>, vector<2x384xf32>
      %76 = vector.shape_cast %75 : vector<2x384xf32> to vector<1x2x384xf32>
      %cst_26 = arith.constant dense<0.000000e+00> : vector<1xf32>
      %77 = vector.multi_reduction <add>, %76, %cst_26 [1, 2] : vector<1x2x384xf32> to vector<1xf32>
      %78 = vector.shape_cast %77 : vector<1xf32> to vector<1x1x1xf32>
      %79 = vector.extract %78[0, 0, 0] : f32 from vector<1x1x1xf32>
      %80 = tpu.iota {dimensions = array<i32: 0>} : vector<8x128xi32>
      %81 = tpu.iota {dimensions = array<i32: 1>} : vector<8x128xi32>
      %c0_i32_27 = arith.constant 0 : i32
      %82 = vector.broadcast %c0_i32_27 : i32 to vector<8x128xi32>
      %83 = arith.cmpi eq, %80, %82 : vector<8x128xi32>
      %c0_i32_28 = arith.constant 0 : i32
      %84 = vector.broadcast %c0_i32_28 : i32 to vector<8x128xi32>
      %85 = arith.cmpi eq, %81, %84 : vector<8x128xi32>
      %86 = arith.andi %83, %85 : vector<8x128xi1>
      %cst_29 = arith.constant 0.000000e+00 : f32
      %87 = vector.broadcast %79 : f32 to vector<8x128xf32>
      %88 = vector.broadcast %cst_29 : f32 to vector<8x128xf32>
      %89 = arith.select %86, %87, %88 : vector<8x128xi1>, vector<8x128xf32>
      %c0_30 = arith.constant 0 : index
      %c0_31 = arith.constant 0 : index
      %90 = vector.load %arg4[%c0_30, %c0_31] : memref<8x128xf32, #tpu.memory_space<vmem>>, vector<8x128xf32>
      tpu.vector_store %arg4[%c0_30, %c0_31], %89 {strides = array<i32>} : memref<8x128xf32, #tpu.memory_space<vmem>>, vector<8x128xf32>,
    } else {
    }
    return
  }
  func.func @transform_0(%arg0: i32, %arg1: i32) -> (i32, i32) {
    %c1_i32 = arith.constant 1 : i32
    %0 = arith.muli %arg0, %c1_i32 : i32
    %1 = arith.addi %0, %arg1 : i32
    %c0_i32 = arith.constant 0 : i32
    %2 = arith.minsi %1, %c0_i32 : i32
    %c0_i32_0 = arith.constant 0 : i32
    %c0_i32_1 = arith.constant 0 : i32
    return %2, %c0_i32_0 : i32, i32
  }
  func.func @transform_1(%arg0: i32, %arg1: i32) -> (i32, i32) {
    %c1_i32 = arith.constant 1 : i32
    %0 = arith.muli %arg0, %c1_i32 : i32
    %1 = arith.addi %0, %arg1 : i32
    %c0_i32 = arith.constant 0 : i32
    %2 = arith.minsi %1, %c0_i32 : i32
    %c0_i32_0 = arith.constant 0 : i32
    %c0_i32_1 = arith.constant 0 : i32
    return %2, %c0_i32_0 : i32, i32
  }
  func.func @transform_2(%arg0: i32, %arg1: i32) -> (i32, i32) {
    %c0_i32 = arith.constant 0 : i32
    %c0_i32_0 = arith.constant 0 : i32
    return %arg0, %c0_i32 : i32, i32
  }
}

</mosaic_0001>

<llo_original>
// kernel: tpu_custom_call.1
$region0: #{tpu_custom_call.1}
  #allocation0 [shape = 'u32[]', space=smem, size = 0x4, offset = 0x4, fixed_abs, tag = 'smem constant byte address 0x4 - core index']
  #allocation1 [shape = 'u32[144,128]{1,0:T(1,128)}', space=vmem, size = 0x12000, scoped, tag = 'internal scratch']
  #allocation2 [shape = 'f32[2,384]{1,0:T(2,128)}', space=vmem, size = 0xc00, scoped, tag = 'scratch operand']
  %s0 = inlined_call_operand.hbm [shape: f32[2,384], index: 0, kind: input, shape index: {}]
  %s1 = inlined_call_operand.hbm [shape: f32[2,384], index: 1, kind: input, shape index: {}]
  %s2 = inlined_call_operand.hbm [shape: f32[16,128], index: 2, kind: output, shape index: {}]
  %s3 = sld [smem:[#allocation0]]
  $region57: #{tpu_custom_call.1} parent=0
    _
  %s5 = ssub.s32 1, %s3
  %s6 = scalar_select 0, %s5, %s3
  $region1: #{tpu_custom_call.1} parent=0
    #allocation3 [shape = 'u8[6144]{0}', space=vmem, size = 0x1800, scoped, tag = 'input window, operand 0']
    #allocation4 [shape = 's32[2]{0}', space=sflag, size = 0x8, scoped, tag = 'scoped memory for tpu_custom_call.1']
    #allocation5 [shape = 's32[2]{0}', space=sflag, size = 0x8, scoped, tag = 'scoped memory for tpu_custom_call.1']
    #allocation6 [shape = 'u8[6144]{0}', space=vmem, size = 0x1800, scoped, tag = 'input window, operand 1']
    #allocation7 [shape = 's32[2]{0}', space=sflag, size = 0x8, scoped, tag = 'scoped memory for tpu_custom_call.1']
    #allocation8 [shape = 'u8[8192]{0}', space=vmem, size = 0x2000, scoped, tag = 'output window, operand 0']
    %7 = vsyncpa [#allocation4], 0
    %s8 = scalar_lea.sflag [#allocation4], 1
    %9 = vsyncpa %s8, 0
    %10 = vsyncpa [#allocation7], 0
    %s11 = scalar_lea.sflag [#allocation7], 1
    %12 = vsyncpa %s11, 0
    %13 = vsyncpa [#allocation5], 0
    %s14 = scalar_lea.sflag [#allocation5], 1
    %15 = vsyncpa %s14, 0
    loop: start=0, step=1, limit=4
    $region2: #{tpu_custom_call.1} parent=1 // loop_pre_header
      _
    $region3: #{tpu_custom_call.1} parent=1 // loop_header
      %s17 = sphi 0, %s21
      %p18 = scmp.ge.s32.totalorder %s17, 4
      %s24 = sphi 0, %s36
      %s25 = sphi 0, %s32
      %s26 = sphi 0, %s24
      %s27 = sphi 0, %s25
      %s28 = sphi 0, %s26
      %s29 = sphi 0, %s27
      %s45 = sphi 0, %s47
      %s48 = sphi 0, %s45
      %s49 = sphi 0, %s48
      %s65 = sphi 0, %s49
      %s77 = sphi 0, %s79
      %s80 = sphi 0, %s77
      %s81 = sphi 0, %s80
      %s97 = sphi 0, %s81
      %s103 = sphi 0, %s105
      %s106 = sphi 0, %s103
      %s107 = sphi 0, %s106
      %s123 = sphi 0, %s107
    $region4: #{tpu_custom_call.1} parent=1 // loop_header_branch
      %20 = sbr.rel (%p18) target = $region8
    $region5: #{tpu_custom_call.1} parent=1 // loop_body
      %s22 = ssub.s32 %s17, 1
      %s23 = ssub.s32 %s17, 2
      %s30 = sadd.s32 1, %s25
      %p31 = scmp.ge.s32.totalorder %s30, 1
      %s32 = scalar_select %p31, 0, %s30
      %s33 = sadd.s32 1, %s24
      %s34 = scalar_select %p31, %s33, %s24
      %p35 = scmp.ge.s32.totalorder %s34, 2
      %s36 = scalar_select %p35, 0, %s34
      %s37 = sadd.s32 %s24, %s25
      %p38 = scmp.lt.s32.totalorder %s37, 0
      %s39 = scalar_select %p38, %s37, 0
      %s40 = sadd.s32 %s36, %s32
      %p41 = scmp.lt.s32.totalorder %s40, 0
      %s42 = scalar_select %p41, %s40, 0
      %s43 = ssub.s32 %s39, %s42
      %p44 = scmp.eq.s32.totalorder %s43, 0
      %s46 = sadd.s32 %s45, 1
      %s47 = scalar_select %p44, %s45, %s46
      %p50 = pneg %p44
      %p51 = scmp.eq.s32.totalorder %s17, 1
      %p52 = por %p50, %p51
      %p53 = scmp.ne.s32.totalorder %s45, %s48
      %p54 = scmp.eq.s32.totalorder %s17, 0
      %p55 = por %p53, %p54
      %p56 = scmp.ne.s32.totalorder %s45, %s48
      %p57 = scmp.eq.s32.totalorder %s22, 1
      %p58 = por %p56, %p57
      %p59 = scmp.ne.s32.totalorder %s48, %s49
      %p60 = scmp.eq.s32.totalorder %s22, 0
      %p61 = por %p59, %p60
      %p62 = scmp.ne.s32.totalorder %s48, %s49
      %p63 = scmp.eq.s32.totalorder %s23, 1
      %p64 = por %p62, %p63
      %p66 = scmp.ne.s32.totalorder %s49, %s65
      %p67 = scmp.eq.s32.totalorder %s23, 0
      %p68 = por %p66, %p67
      %s69 = sadd.s32 %s24, %s25
      %p70 = scmp.lt.s32.totalorder %s69, 0
      %s71 = scalar_select %p70, %s69, 0
      %s72 = sadd.s32 %s36, %s32
      %p73 = scmp.lt.s32.totalorder %s72, 0
      %s74 = scalar_select %p73, %s72, 0
      %s75 = ssub.s32 %s71, %s74
      %p76 = scmp.eq.s32.totalorder %s75, 0
      %s78 = sadd.s32 %s77, 1
      %s79 = scalar_select %p76, %s77, %s78
      %p82 = pneg %p76
      %p83 = scmp.eq.s32.totalorder %s17, 1
      %p84 = por %p82, %p83
      %p85 = scmp.ne.s32.totalorder %s77, %s80
      %p86 = scmp.eq.s32.totalorder %s17, 0
      %p87 = por %p85, %p86
      %p88 = scmp.ne.s32.totalorder %s77, %s80
      %p89 = scmp.eq.s32.totalorder %s22, 1
      %p90 = por %p88, %p89
      %p91 = scmp.ne.s32.totalorder %s80, %s81
      %p92 = scmp.eq.s32.totalorder %s22, 0
      %p93 = por %p91, %p92
      %p94 = scmp.ne.s32.totalorder %s80, %s81
      %p95 = scmp.eq.s32.totalorder %s23, 1
      %p96 = por %p94, %p95
      %p98 = scmp.ne.s32.totalorder %s81, %s97
      %p99 = scmp.eq.s32.totalorder %s23, 0
      %p100 = por %p98, %p99
      %s101 = ssub.s32 %s24, %s36
      %p102 = scmp.eq.s32.totalorder %s101, 0
      %s104 = sadd.s32 %s103, 1
      %s105 = scalar_select %p102, %s103, %s104
      %p108 = pneg %p102
      %p109 = scmp.eq.s32.totalorder %s17, 1
      %p110 = por %p108, %p109
      %p111 = scmp.ne.s32.totalorder %s103, %s106
      %p112 = scmp.eq.s32.totalorder %s17, 0
      %p113 = por %p111, %p112
      %p114 = scmp.ne.s32.totalorder %s103, %s106
      %p115 = scmp.eq.s32.totalorder %s22, 1
      %p116 = por %p114, %p115
      %p117 = scmp.ne.s32.totalorder %s106, %s107
      %p118 = scmp.eq.s32.totalorder %s22, 0
      %p119 = por %p117, %p118
      %p120 = scmp.ne.s32.totalorder %s106, %s107
      %p121 = scmp.eq.s32.totalorder %s23, 1
      %p122 = por %p120, %p121
      %p124 = scmp.ne.s32.totalorder %s107, %s123
      %p125 = scmp.eq.s32.totalorder %s23, 0
      %p126 = por %p124, %p125
      %p127 = scmp.le.s32.totalorder 1, %s17
      %p128 = scmp.lt.s32.totalorder %s17, 3
      %p129 = pnand %p127, %p128
      %p130 = pneg %p129
      // Predicated region
      $region9: #{tpu_custom_call.1} parent=5 // pred_check
        _
      $region10: #{tpu_custom_call.1} parent=5 // pred_check_branch
        %132 = sbr.rel (%p129) target = $region12
      $region11: #{tpu_custom_call.1} parent=5 // pred_region
        %s133 = ssub.s32 %s17, 1
      $region12: #{tpu_custom_call.1} parent=5 // pred_fallthru
        _
      %p134 = scmp.lt.s32.totalorder %s17, 2
      // Predicated region
      $region13: #{tpu_custom_call.1} parent=5 // pred_check
        %p135 = pneg %p134
      $region14: #{tpu_custom_call.1} parent=5 // pred_check_branch
        %137 = sbr.rel (%p135) target = $region16
      $region15: #{tpu_custom_call.1} parent=5 // pred_region
        // Predicated region
        $region17: #{tpu_custom_call.1} parent=15 // pred_check
          %p138 = pneg %p55
        $region18: #{tpu_custom_call.1} parent=15 // pred_check_branch
          %140 = sbr.rel (%p138) target = $region20
        $region19: #{tpu_custom_call.1} parent=15 // pred_region
          %s141 = sand.u32 %s45, 1
          %s142 = scalar_lea.sflag [#allocation4], %s141
          %s143 = sand.u32 %s45, 1
          %s144 = smul.addr %s143, 6
          %s145 = scalar_lea.vmem [#allocation3], %s144
          %s146 = sadd.s32 %s24, %s25
          %p147 = scmp.lt.s32.totalorder %s146, 0
          %s148 = scalar_select %p147, %s146, 0
          %s150 = ssub.s32 96, 96
          %151 = vsyncadd %s142, %s150
          %s152 = smul.addr %s148, 3
          %s153 = smul.addr %s152, 32
          %s154 = scalar_lea.hbm %s0, %s153
          %s156 = sshll.u32 %s145, 4
          %s157 = int_to_ptr.vmem [resolvable:$true] %s156
          %159 = dma.hbm_to_vmem [thread:$0]  %s154, 96, %s157, %s142
        $region20: #{tpu_custom_call.1} parent=15 // pred_fallthru
          _
        // Predicated region
        $region21: #{tpu_custom_call.1} parent=15 // pred_check
          %p160 = pneg %p87
        $region22: #{tpu_custom_call.1} parent=15 // pred_check_branch
          %162 = sbr.rel (%p160) target = $region24
        $region23: #{tpu_custom_call.1} parent=15 // pred_region
          %s163 = sand.u32 %s77, 1
          %s164 = scalar_lea.sflag [#allocation7], %s163
          %s165 = sand.u32 %s77, 1
          %s166 = smul.addr %s165, 6
          %s167 = scalar_lea.vmem [#allocation6], %s166
          %s168 = sadd.s32 %s24, %s25
          %p169 = scmp.lt.s32.totalorder %s168, 0
          %s170 = scalar_select %p169, %s168, 0
          %s172 = ssub.s32 96, 96
          %173 = vsyncadd %s164, %s172
          %s174 = smul.addr %s170, 3
          %s175 = smul.addr %s174, 32
          %s176 = scalar_lea.hbm %s1, %s175
          %s178 = sshll.u32 %s167, 4
          %s179 = int_to_ptr.vmem [resolvable:$true] %s178
          %181 = dma.hbm_to_vmem [thread:$0]  %s176, 96, %s179, %s164
        $region24: #{tpu_custom_call.1} parent=15 // pred_fallthru
          _
      $region16: #{tpu_custom_call.1} parent=5 // pred_fallthru
        _
      %p182 = scmp.le.s32.totalorder 1, %s17
      %p183 = scmp.lt.s32.totalorder %s17, 3
      %p184 = pnand %p182, %p183
      %p185 = pneg %p184
      // Predicated region
      $region25: #{tpu_custom_call.1} parent=5 // pred_check
        _
      $region26: #{tpu_custom_call.1} parent=5 // pred_check_branch
        %187 = sbr.rel (%p184) target = $region28
      $region27: #{tpu_custom_call.1} parent=5 // pred_region
        %s188 = ssub.s32 %s17, 1
        %s189 = sand.u32 %s48, 1
        %s190 = scalar_lea.sflag [#allocation4], %s189
        %s191 = sand.u32 %s48, 1
        %s192 = smul.addr %s191, 6
        %s193 = scalar_lea.vmem [#allocation3], %s192
        // Predicated region
        $region29: #{tpu_custom_call.1} parent=27 // pred_check
          %p194 = pneg %p61
        $region30: #{tpu_custom_call.1} parent=27 // pred_check_branch
          %196 = sbr.rel (%p194) target = $region32
        $region31: #{tpu_custom_call.1} parent=27 // pred_region
          %197 = dma.done %s190, 96
        $region32: #{tpu_custom_call.1} parent=27 // pred_fallthru
          _
        %s198 = sand.u32 %s80, 1
        %s199 = scalar_lea.sflag [#allocation7], %s198
        %s200 = sand.u32 %s80, 1
        %s201 = smul.addr %s200, 6
        %s202 = scalar_lea.vmem [#allocation6], %s201
        // Predicated region
        $region33: #{tpu_custom_call.1} parent=27 // pred_check
          %p203 = pneg %p93
        $region34: #{tpu_custom_call.1} parent=27 // pred_check_branch
          %205 = sbr.rel (%p203) target = $region36
        $region35: #{tpu_custom_call.1} parent=27 // pred_region
          %206 = dma.done %s199, 96
        $region36: #{tpu_custom_call.1} parent=27 // pred_fallthru
          _
        %s207 = sand.u32 %s48, 1
        %s208 = scalar_lea.sflag [#allocation4], %s207
        %s209 = sand.u32 %s48, 1
        %s210 = smul.addr %s209, 6
        %s211 = scalar_lea.vmem [#allocation3], %s210
        %p212 = pneg %p61
        %p213 = pneg %p58
        %s214 = sand.u32 %s80, 1
        %s215 = scalar_lea.sflag [#allocation7], %s214
        %s216 = sand.u32 %s80, 1
        %s217 = smul.addr %s216, 6
        %s218 = scalar_lea.vmem [#allocation6], %s217
        %p219 = pneg %p93
        %p220 = pneg %p90
        %p221 = pneg %p119
        %p222 = pneg %p116
        %s223 = sand.u32 %s106, 1
        %s224 = scalar_lea.sflag [#allocation5], %s223
        %s225 = sand.u32 %s106, 1
        %s226 = smul.addr %s225, 8
        %s227 = scalar_lea.vmem [#allocation8], %s226
        %s228 = sadd.s32 %s26, %s27
        %p229 = scmp.lt.s32.totalorder %s228, 0
        %s230 = scalar_select %p229, %s228, 0
        %s231 = sadd.s32 %s26, %s27
        %p232 = scmp.lt.s32.totalorder %s231, 0
        %s233 = scalar_select %p232, %s231, 0
        %p234 = scmp.eq.s32.totalorder %s27, 0
        // Predicated region
        $region37: #{tpu_custom_call.1} parent=27 // pred_check
          %p235 = pneg %p234
        $region38: #{tpu_custom_call.1} parent=27 // pred_check_branch
          %237 = sbr.rel (%p235) target = $region40
        $region39: #{tpu_custom_call.1} parent=27 // pred_region
          %238 = vst [vmem:[#allocation2] sm:$0x3f] 0.0
          %239 = vst [vmem:[%s227] sm:$0xff] 0.0
        $region40: #{tpu_custom_call.1} parent=27 // pred_fallthru
          _
        %v240 = vld [vmem:[%s193] sm:$0x3f]
        %v241 = vld [vmem:[%s202] sm:$0x3f]
        %v242 = vlaneseq
        %v243 = vand.u32 %v242, 127
        %v244 = vadd.s32 %v243, 128
        %v245 = vadd.s32 %v243, 256
        %vm246 = vcmp.lt.s32.totalorder %v243, 0
        %v247 = vsub.s32 0, %v243
        %v248 = vsel %vm246, %v247, %v243
        %v249 = vmul.u32.u64.compose %v248, 2863311531
        %v250 = vextract.low.u32 %v249
        %v251 = vextract.high.u32 %v249
        %v252 = vshrl.u32 %v251, 2
        %v253 = vmul.u32 %v252, 6
        %v254 = vsub.s32 %v248, %v253
        %v255 = vsub.s32 0, %v254
        %v256 = vsel %vm246, %v255, %v254
        %vm257 = vcmp.lt.s32.totalorder %v244, 0
        %v258 = vsub.s32 0, %v244
        %v259 = vsel %vm257, %v258, %v244
        %v260 = vmul.u32.u64.compose %v259, 2863311531
        %v261 = vextract.low.u32 %v260
        %v262 = vextract.high.u32 %v260
        %v263 = vshrl.u32 %v262, 2
        %v264 = vmul.u32 %v263, 6
        %v265 = vsub.s32 %v259, %v264
        %v266 = vsub.s32 0, %v265
        %v267 = vsel %vm257, %v266, %v265
        %vm268 = vcmp.lt.s32.totalorder %v245, 0
        %v269 = vsub.s32 0, %v245
        %v270 = vsel %vm268, %v269, %v245
        %v271 = vmul.u32.u64.compose %v270, 2863311531
        %v272 = vextract.low.u32 %v271
        %v273 = vextract.high.u32 %v271
        %v274 = vshrl.u32 %v273, 2
        %v275 = vmul.u32 %v274, 6
        %v276 = vsub.s32 %v270, %v275
        %v277 = vsub.s32 0, %v276
        %v278 = vsel %vm268, %v277, %v276
        %vm279 = vcmp.ne.s32.totalorder %v256, 0
        %vm280 = vcmp.ne.s32.totalorder %v267, 0
        %vm281 = vcmp.ne.s32.totalorder %v278, 0
        %vm282 = vcmp.lt.s32.totalorder %v256, 0
        %vm283 = vcmp.lt.s32.totalorder %v267, 0
        %vm284 = vcmp.lt.s32.totalorder %v278, 0
        %vm285 = vmand %vm282, %vm279
        %vm286 = vmand %vm283, %vm280
        %vm287 = vmand %vm284, %vm281
        %v288 = vadd.s32 %v256, 6
        %v289 = vadd.s32 %v267, 6
        %v290 = vadd.s32 %v278, 6
        %v291 = vsel %vm285, %v288, %v256
        %v292 = vsel %vm286, %v289, %v267
        %v293 = vsel %vm287, %v290, %v278
        %vm294 = vcmp.ge.s32.totalorder %v291, 4
        %vm295 = vcmp.ge.s32.totalorder %v292, 4
        %vm296 = vcmp.ge.s32.totalorder %v293, 4
        %vm297 = vcmp.lt.s32.totalorder %v291, 2
        %vm298 = vcmp.lt.s32.totalorder %v292, 2
        %vm299 = vcmp.lt.s32.totalorder %v293, 2
        %vm300 = vcmp.lt.s32.totalorder %v291, 4
        %vm301 = vcmp.lt.s32.totalorder %v292, 4
        %vm302 = vcmp.lt.s32.totalorder %v293, 4
        %vm303 = vcmp.eq.s32.totalorder %v291, 4
        %vm304 = vcmp.eq.s32.totalorder %v292, 4
        %vm305 = vcmp.eq.s32.totalorder %v293, 4
        %v306 = vsel %vm303, 0.0078125, 0.00859375
        %v307 = vsel %vm304, 0.0078125, 0.00859375
        %v308 = vsel %vm305, 0.0078125, 0.00859375
        %v309 = vsel %vm300, 0.0001953125, %v306
        %v310 = vsel %vm301, 0.0001953125, %v307
        %v311 = vsel %vm302, 0.0001953125, %v308
        %v312 = vsel %vm297, 0.0001953125, %v309
        %v313 = vsel %vm298, 0.0001953125, %v310
        %v314 = vsel %vm299, 0.0001953125, %v311
        %v315 = vlaneseq
        %v316 = vshrl.u32 %v315, 7
        %s317 = sadd.s32 %s26, %s27
        %s318 = smul.u32 %s317, 2
        %v319 = vstv %s318
        %v320 = vadd.s32 %v319, %v316
        %v321 = vmul.u32 %v320, 384
        %v322 = vadd.s32 %v321, %v243
        %v323 = vadd.s32 %v321, %v244
        %v324 = vadd.s32 %v321, %v245
        %vm325 = vcmp.lt.s32.totalorder %v322, 768
        %vm326 = vcmp.lt.s32.totalorder %v323, 768
        %vm327 = vcmp.lt.s32.totalorder %v324, 768
        %v328 = vsub.f32 %v240, %v241
        %v329 = vmul.f32 %v328, %v328
        %v330 = vmax.f32 %v240, 0.0
        %v331 = vmul.f32 %v240, %v241
        %v332 = vsub.f32 %v330, %v331
        %v333 = vand.u32 2147483647, %v240
        %v334 = vsub.f32 0.0, %v333
        %v335 = vmul.f32 %v334, 1.442695
        %v336 = vpow.pop %v335
        %v337 = vadd.f32 %v336, 1.0
        %v338 = vlog2.pop %v337
        %v339 = vmul.f32 %v338, 0.6931472
        %v340 = vmul.f32 -0.5, %v336
        %v341 = vadd.f32 %v340, 1.0
        %v342 = vmul.f32 %v341, %v336
        %v343 = vand.u32 2147483647, %v336
        %vm344 = vcmp.lt.f32.partialorder %v343, 0.0004427343
        %v345 = vsel %vm344, %v342, %v339
        %v346 = vadd.f32 %v332, %v345
        %v347 = vsel %vm294, 1, 0
        %v348 = vsel %vm295, 1, 0
        %v349 = vsel %vm296, 1, 0
        %vm350 = vcmp.eq.s32.totalorder %v347, 1
        %vm351 = vcmp.eq.s32.totalorder %v348, 1
        %vm352 = vcmp.eq.s32.totalorder %v349, 1
        %v354 = vcombine.high %v346, %v346
        %v356 = vunpack.c.l.s4 1983009808
        %v357 = vunpack.c.0.s8 %v356
        %v358 = vlaneseq
        %v359 = vshrl.u32 %v358, 7
        %v360 = vsub.s32 %v357, %v359
        %v361 = vrot.slane %v346, %v360
        %v363 = vunpack.c.l.s4 1983009808
        %v364 = vunpack.c.0.s8 %v363
        %v365 = vlaneseq
        %v366 = vshrl.u32 %v365, 7
        %v367 = vsub.s32 %v364, %v366
        %v368 = vrot.slane %v354, %v367
        %v369 = vcombine.high %v361, %v361
        %v374 = vcombine.high %v329, %v329
        %v376 = vunpack.c.l.s4 1983009808
        %v377 = vunpack.c.0.s8 %v376
        %v378 = vlaneseq
        %v379 = vshrl.u32 %v378, 7
        %v380 = vsub.s32 %v377, %v379
        %v381 = vrot.slane %v329, %v380
        %v383 = vunpack.c.l.s4 1983009808
        %v384 = vunpack.c.0.s8 %v383
        %v385 = vlaneseq
        %v386 = vshrl.u32 %v385, 7
        %v387 = vsub.s32 %v384, %v386
        %v388 = vrot.slane %v374, %v387
        %v389 = vcombine.high %v381, %v381
        %v393 = vsel %vm350, %v361, %v381
        %v394 = vsel %vm351, %v369, %v389
        %v395 = vsel %vm352, %v368, %v388
        %v396 = vmul.f32 %v393, %v312
        %v397 = vmul.f32 %v394, %v313
        %v398 = vmul.f32 %v395, %v314
        %v399 = vld [vmem:[#allocation2] sm:$0x3f]
        %v400 = vsel %vm325, %v396, 0.0
        %v401 = vsel %vm326, %v397, 0.0
        %v402 = vsel %vm327, %v398, 0.0
        %v406 = vcombine.low %v400, %v401
        %v408 = vunpack.c.l.s4 1983009808
        %v409 = vunpack.c.0.s8 %v408
        %v410 = vlaneseq
        %v411 = vshrl.u32 %v410, 7
        %v412 = vsub.s32 %v409, %v411
        %v413 = vrot.slane %v406, %v412
        %v415 = vunpack.c.l.s4 1983009808
        %v416 = vunpack.c.0.s8 %v415
        %v417 = vlaneseq
        %v418 = vshrl.u32 %v417, 7
        %v419 = vsub.s32 %v416, %v418
        %v420 = vrot.slane %v402, %v419
        %v421 = vcombine.low %v413, %v420
        %v423 = vadd.f32 %v399, %v421
        %424 = vst [vmem:[#allocation2] sm:$0x3f] %v423
        // Predicated region
        $region41: #{tpu_custom_call.1} parent=27 // pred_check
          %p425 = pneg %p234
        $region42: #{tpu_custom_call.1} parent=27 // pred_check_branch
          %427 = sbr.rel (%p425) target = $region44
        $region43: #{tpu_custom_call.1} parent=27 // pred_region
          %v428 = vld [vmem:[#allocation2] sm:$0x3f]
          %v430 = vcombine.high %v428, %v428
          %v432 = vunpack.c.l.s4 1983009808
          %v433 = vunpack.c.0.s8 %v432
          %v434 = vlaneseq
          %v435 = vshrl.u32 %v434, 7
          %v436 = vsub.s32 %v433, %v435
          %v437 = vrot.slane %v428, %v436
          %v439 = vunpack.c.l.s4 1983009808
          %v440 = vunpack.c.0.s8 %v439
          %v441 = vlaneseq
          %v442 = vshrl.u32 %v441, 7
          %v443 = vsub.s32 %v440, %v442
          %v444 = vrot.slane %v430, %v443
          %v445 = vcombine.high %v437, %v437
          %vm449 = vcmask 1041408
          %v450 = vsel %vm449, %v437, 0.0
          %v451 = vsel %vm449, %v445, 0.0
          %v452 = vadd.f32 %v450, %v451
          %v453 = vsel %vm449, %v444, 0.0
          %v454 = vadd.f32 %v452, %v453
          %455 = vadd.xlane.f32.xlu0 %v454
          %v456 = vpop.xlane.xlu0 %455
          %v457 = vrot.slane %v456, 4
          %v458 = vadd.f32 %v456, %v457
          %v459 = vrot.slane %v458, 2
          %v460 = vadd.f32 %v458, %v459
          %v461 = vrot.slane %v460, 1
          %v462 = vadd.f32 %v460, %v461
          %s463 = vtos %v462
          %vm464 = vcmp.eq.s32.totalorder %v316, 0
          %vm465 = vcmp.eq.s32.totalorder %v243, 0
          %vm466 = vmand %vm464, %vm465
          %v467 = vstv %s463
          %v468 = vsel %vm466, %v467, 0.0
          %469 = vst [vmem:[%s227] sm:$0xff] %v468
        $region44: #{tpu_custom_call.1} parent=27 // pred_fallthru
          _
        %s470 = sand.u32 %s106, 1
        %s471 = scalar_lea.sflag [#allocation5], %s470
        %s472 = sand.u32 %s106, 1
        %s473 = smul.addr %s472, 8
        %s474 = scalar_lea.vmem [#allocation8], %s473
        // Predicated region
        $region45: #{tpu_custom_call.1} parent=27 // pred_check
          %p475 = pneg %p116
        $region46: #{tpu_custom_call.1} parent=27 // pred_check_branch
          %477 = sbr.rel (%p475) target = $region48
        $region47: #{tpu_custom_call.1} parent=27 // pred_region
          %s479 = ssub.s32 128, 128
          %480 = vsyncadd %s471, %s479
          %s481 = smul.addr %s26, 128
          %s482 = scalar_lea.hbm %s2, %s481
          %s484 = sshll.u32 %s474, 4
          %s485 = int_to_ptr.vmem [resolvable:$true] %s484
          %487 = dma.vmem_to_hbm [thread:$0]  %s485, 128, %s482, %s471
        $region48: #{tpu_custom_call.1} parent=27 // pred_fallthru
          _
      $region28: #{tpu_custom_call.1} parent=5 // pred_fallthru
        _
      %p488 = scmp.le.s32.totalorder 2, %s17
      // Predicated region
      $region49: #{tpu_custom_call.1} parent=5 // pred_check
        %p489 = pneg %p488
      $region50: #{tpu_custom_call.1} parent=5 // pred_check_branch
        %491 = sbr.rel (%p489) target = $region52
      $region51: #{tpu_custom_call.1} parent=5 // pred_region
        %s492 = ssub.s32 %s17, 2
        // Predicated region
        $region53: #{tpu_custom_call.1} parent=51 // pred_check
          %p493 = pneg %p122
        $region54: #{tpu_custom_call.1} parent=51 // pred_check_branch
          %495 = sbr.rel (%p493) target = $region56
        $region55: #{tpu_custom_call.1} parent=51 // pred_region
          %s496 = sand.u32 %s107, 1
          %s497 = scalar_lea.sflag [#allocation5], %s496
          %s498 = sand.u32 %s107, 1
          %s499 = smul.addr %s498, 8
          %s500 = scalar_lea.vmem [#allocation8], %s499
          %501 = dma.done %s497, 128
        $region56: #{tpu_custom_call.1} parent=51 // pred_fallthru
          _
      $region52: #{tpu_custom_call.1} parent=5 // pred_fallthru
        _
    $region6: #{tpu_custom_call.1} parent=1 // loop_footer
      %s21 = sadd.s32 1, %s17
    $region7: #{tpu_custom_call.1} parent=1 // loop_footer_branch
      %16 = sbr.rel target = $region3
    $region8: #{tpu_custom_call.1} parent=1 // loop_exit
      _
    %502 = vsyncpa [#allocation4], 1
    %s503 = scalar_lea.sflag [#allocation4], 1
    %504 = vsyncpa %s503, 1
    %505 = vsyncpa [#allocation7], 1
    %s506 = scalar_lea.sflag [#allocation7], 1
    %507 = vsyncpa %s506, 1
    %508 = vsyncpa [#allocation5], 1
    %s509 = scalar_lea.sflag [#allocation5], 1
    %510 = vsyncpa %s509, 1

</llo_original>
